<compile_context>
chip_gen: v7x
topology: tpu7x:2x2x1
jax: 0.10.0
libtpu: 0.0.40
codegen_flags: <defaults>
</compile_context>

<pallas_src>
import jax
import jax.numpy as jnp
import numpy as np
from jax import lax
from jax.experimental import pallas as pl
from jax.experimental.pallas import tpu as pltpu

# ----------------------------- config (small, synthetic) --------------------
HIDDEN = 32          # config.hidden_size
NUM_HEADS = 4        # config.num_attention_heads
NUM_KV_HEADS = 2     # config.num_key_value_heads
HEAD_DIM = 16        # config.head_dim
SEQ = 8              # number of tokens
EPS = 1e-6           # config.rms_norm_eps
ROPE_BASE = 10000.0  # rope_theta
# Gemma3n uses scaling = 1.0 -> omitted from the kernel.

Q_SIZE = NUM_HEADS * HEAD_DIM
KV_SIZE = NUM_KV_HEADS * HEAD_DIM
QKV_SIZE = Q_SIZE + 2 * KV_SIZE
GROUP = NUM_HEADS // NUM_KV_HEADS
BF16 = jnp.bfloat16


# ----------------------------- trace-time (numpy) constants ------------------
def _build_blk_perm_const():
    """[Q_SIZE, 2*Q_SIZE] f32: [block-diag ones | signed rotate-half perm]."""
    w = Q_SIZE
    half = HEAD_DIM // 2
    r = np.arange(w)[:, None]
    c = np.arange(w)[None, :]
    same_head = (r // HEAD_DIM) == (c // HEAD_DIM)
    blk = same_head.astype(np.float32)                          # per-head ones
    ri = r % HEAD_DIM
    ci = c % HEAD_DIM
    perm = (np.where(same_head & (ri == ci + half), -1.0, 0.0) +
            np.where(same_head & (ci >= half) & (ri == ci - half), 1.0, 0.0))
    return np.concatenate([blk, perm.astype(np.float32)], axis=1)


def _build_causal_bias(T):
    """[GROUP*T, T] f32 additive bias (0 on/below diag, -1e30 above)."""
    m = np.where(np.tril(np.ones((T, T), dtype=bool)), 0.0, -1e30)
    return np.tile(m.astype(np.float32), (GROUP, 1))


_BLK_PERM_F32 = _build_blk_perm_const()                         # values 0 / +-1


# ----------------------------- fused Pallas kernel ---------------------------
def _gemma3n_attn_fused_kernel(x_ref, wqkv_ref, wo_ref, cs_ref, gam_ref,
                               const_ref, bias_ref, o_ref, attn_ref):
    T = x_ref.shape[0]

    # --- qkv projection: torch [out, in] weight, contract on its last dim ----
    x = x_ref[...]                                              # [T, HIDDEN] f32
    qkv = lax.dot_general(
        x.astype(BF16), wqkv_ref[...],
        dimension_numbers=(((1,), (1,)), ((), ())),
        preferred_element_type=jnp.float32)                     # [T, QKV] f32
    q = qkv[:, :Q_SIZE]                                         # [T, NH*D]
    k = qkv[:, Q_SIZE:Q_SIZE + KV_SIZE]                         # [T, NKV*D]
    v = qkv[:, Q_SIZE + KV_SIZE:]                               # [T, NKV*D]

    # --- static constants (loaded once, kv-head versions are prefixes) -------
    consts = const_ref[...]                                     # [Q_SIZE, 2Q] bf16
    blk_q = consts[:, :Q_SIZE]                                  # block-diag ones
    perm_q = consts[:, Q_SIZE:]                                 # rotate-half perm
    blk_kv = blk_q[:KV_SIZE, :KV_SIZE]
    perm_kv = perm_q[:KV_SIZE, :KV_SIZE]

    gam = gam_ref[...]                                          # [1, Q+KV] f32
    gq = gam[:, :Q_SIZE]
    gk = gam[:, Q_SIZE:]

    # --- per-head RMSNorm on lane-dense rows (block-diag matmul on MXU) ------
    def grouped_rms(t, blk, gamma=None):
        ss = jnp.dot((t * t).astype(BF16), blk,
                     preferred_element_type=jnp.float32)
        inv = lax.rsqrt(ss * (1.0 / HEAD_DIM) + EPS)
        y = t * inv
        return y if gamma is None else y * gamma

    q = grouped_rms(q, blk_q, gq)
    k = grouped_rms(k, blk_kv, gk)
    v = grouped_rms(v, blk_kv)          # v_norm: with_scale=False (gamma == 1)

    # --- RoPE (neox): rotate-half via signed permutation matmul --------------
    cs = cs_ref[...]                                            # [T, 2*Q_SIZE]
    cos_q = cs[:, :Q_SIZE]
    sin_q = cs[:, Q_SIZE:]
    cos_k = cos_q[:, :KV_SIZE]          # kv tiling is a prefix of q tiling
    sin_k = sin_q[:, :KV_SIZE]

    def rope(t, perm, cos, sin):
        rot = jnp.dot(t.astype(BF16), perm,
                      preferred_element_type=jnp.float32)
        return t * cos + rot * sin

    q = rope(q, perm_q, cos_q, sin_q)
    k = rope(k, perm_kv, cos_k, sin_k)

    # --- causal GQA attention; per-head outputs written lane-dense to scratch
    bias = bias_ref[...]                                        # [GROUP*T, T]
    for g in range(NUM_KV_HEADS):
        k_g = k[:, g * HEAD_DIM:(g + 1) * HEAD_DIM].astype(BF16)   # [T, D]
        v_g = v[:, g * HEAD_DIM:(g + 1) * HEAD_DIM].astype(BF16)   # [T, D]
        # stack the GROUP q-heads of this kv-group along sublanes (head-major)
        q_g = jnp.concatenate(
            [q[:, (g * GROUP + j) * HEAD_DIM:(g * GROUP + j + 1) * HEAD_DIM]
             for j in range(GROUP)], axis=0).astype(BF16)          # [G*T, D]
        s = lax.dot_general(
            q_g, k_g,
            dimension_numbers=(((1,), (1,)), ((), ())),
            preferred_element_type=jnp.float32)                    # [G*T, T]
        s = s + bias                                               # causal bias
        m = jnp.max(s, axis=-1, keepdims=True)
        p = jnp.exp(s - m)
        denom = jnp.sum(p, axis=-1, keepdims=True)
        o_g = jnp.dot(p.astype(BF16), v_g,
                      preferred_element_type=jnp.float32)           # [G*T, D]
        # normalize AFTER PV (scales [rows, D], not [rows, T_kv]); EUP recip
        o_g = (o_g * pl.reciprocal(denom, approx=True)).astype(BF16)
        for j in range(GROUP):
            h = g * GROUP + j
            attn_ref[:, h * HEAD_DIM:(h + 1) * HEAD_DIM] = o_g[j * T:(j + 1) * T, :]

    # --- single fused o_proj matmul ([T, Q_SIZE] x [HIDDEN, Q_SIZE]^T) -------
    out = lax.dot_general(
        attn_ref[...], wo_ref[...],
        dimension_numbers=(((1,), (1,)), ((), ())),
        preferred_element_type=jnp.float32)                         # [T, HIDDEN]
    o_ref[...] = out


# ----------------------------- wrapper ---------------------------------------
def rope_cos_sin(positions):
    """Neox-style cos/sin, expanded to full head_dim ([T, HEAD_DIM])."""
    half = HEAD_DIM // 2
    inv_freq = 1.0 / (ROPE_BASE ** (jnp.arange(0, half, dtype=jnp.float32)
                                    * 2.0 / HEAD_DIM))
    freqs = positions.astype(jnp.float32)[:, None] * inv_freq[None, :]
    cos = jnp.cos(freqs)
    sin = jnp.sin(freqs)
    return (jnp.concatenate([cos, cos], axis=-1),
            jnp.concatenate([sin, sin], axis=-1))


def _full_spec(shape):
    return pl.BlockSpec(shape, lambda: (0,) * len(shape))


@jax.jit
def gemma3n_attention_forward(hidden_states, positions, params):
    T = hidden_states.shape[0]

    # lane-dense packed side inputs (cheap, constant-foldable under jit)
    cos_hd, sin_hd = rope_cos_sin(positions)                    # [T, HEAD_DIM]
    cs = jnp.concatenate([jnp.tile(cos_hd, (1, NUM_HEADS)),
                          jnp.tile(sin_hd, (1, NUM_HEADS))], axis=-1)  # [T, 2Q]
    gam = jnp.concatenate([jnp.tile(params["q_norm_w"], (1, NUM_HEADS)),
                           jnp.tile(params["k_norm_w"], (1, NUM_KV_HEADS))],
                          axis=-1)                              # [1, Q+KV]
    w_qkv = params["w_qkv"].astype(BF16)                        # torch layout
    w_o = params["w_o"].astype(BF16)
    consts = jnp.asarray(_BLK_PERM_F32).astype(BF16)            # exact in bf16
    bias = jnp.asarray(_build_causal_bias(T))                   # [GROUP*T, T]

    return pl.pallas_call(
        _gemma3n_attn_fused_kernel,
        out_shape=jax.ShapeDtypeStruct((T, HIDDEN), jnp.float32),
        in_specs=[_full_spec((T, HIDDEN)),
                  _full_spec((QKV_SIZE, HIDDEN)),
                  _full_spec((HIDDEN, Q_SIZE)),
                  _full_spec((T, 2 * Q_SIZE)),
                  _full_spec((1, Q_SIZE + KV_SIZE)),
                  _full_spec((Q_SIZE, 2 * Q_SIZE)),
                  _full_spec((GROUP * T, T))],
        out_specs=_full_spec((T, HIDDEN)),
        scratch_shapes=[pltpu.VMEM((T, Q_SIZE), BF16)],
    )(hidden_states, w_qkv, w_o, cs, gam, consts, bias)


# ----------------------------- pure-JAX reference -----------------------------
def reference_forward(hidden_states, positions, params):
    T = hidden_states.shape[0]
    qkv = hidden_states @ params["w_qkv"].T
    q = qkv[:, :Q_SIZE]
    k = qkv[:, Q_SIZE:Q_SIZE + KV_SIZE]
    v = qkv[:, Q_SIZE + KV_SIZE:]

    def rms(x, w):
        var = jnp.mean(x * x, axis=-1, keepdims=True)
        return x * lax.rsqrt(var + EPS) * w

    q = rms(q.reshape(T, NUM_HEADS, HEAD_DIM), params["q_norm_w"][0])
    k = rms(k.reshape(T, NUM_KV_HEADS, HEAD_DIM), params["k_norm_w"][0])
    v = rms(v.reshape(T, NUM_KV_HEADS, HEAD_DIM), params["v_norm_w"][0])

    cos_hd, sin_hd = rope_cos_sin(positions)
    cos = cos_hd[:, None, :]
    sin = sin_hd[:, None, :]

    def rope(x):
        half = HEAD_DIM // 2
        x1, x2 = x[..., :half], x[..., half:]
        rot = jnp.concatenate([-x2, x1], axis=-1)
        return x * cos + rot * sin

    q, k = rope(q), rope(k)
    k_rep = jnp.repeat(k, GROUP, axis=1)
    v_rep = jnp.repeat(v, GROUP, axis=1)
    s = jnp.einsum("thd,shd->hts", q, k_rep)          # scaling == 1.0
    mask = jnp.tril(jnp.ones((T, T), bool))
    s = jnp.where(mask[None], s, -1e30)
    p = jax.nn.softmax(s, axis=-1)
    o = jnp.einsum("hts,shd->thd", p, v_rep).reshape(T, Q_SIZE)
    return o @ params["w_o"].T


# ----------------------------- main -------------------------------------------
if __name__ == "__main__":
    key = jax.random.PRNGKey(0)
    k1, k2, k3, k4, k5 = jax.random.split(key, 5)

    params = {
        # qkv_proj weight: [(q_size + 2*kv_size), hidden]  (torch Linear layout)
        "w_qkv": 0.02 * jax.random.normal(k1, (QKV_SIZE, HIDDEN), jnp.float32),
        # o_proj weight: [hidden, num_heads*head_dim]      (torch Linear layout)
        "w_o": 0.02 * jax.random.normal(k2, (HIDDEN, Q_SIZE), jnp.float32),
        # Gemma3nRMSNorm weights (per-head, [1, head_dim])
        "q_norm_w": (1.0 + 0.1 * jax.random.normal(k3, (1, HEAD_DIM), jnp.float32)),
        "k_norm_w": (1.0 + 0.1 * jax.random.normal(k4, (1, HEAD_DIM), jnp.float32)),
        # v_norm: with_scale=False -> weight is a ones buffer
        "v_norm_w": jnp.ones((1, HEAD_DIM), jnp.float32),
    }

    hidden_states = jax.random.normal(k5, (SEQ, HIDDEN), jnp.float32)
    positions = jnp.arange(SEQ, dtype=jnp.int32)

    out = gemma3n_attention_forward(hidden_states, positions, params)
    out = jax.block_until_ready(out)

    ref = reference_forward(hidden_states, positions, params)
    np.testing.assert_allclose(np.asarray(out), np.asarray(ref),
                               rtol=2e-2, atol=2e-2)

    print("KERNEL_OK")
</pallas_src>

<mosaic_0001>
module attributes {stable_mosaic.version = 11 : i64} {
  func.func @_gemma3n_attn_fused_kernel(%arg0: memref<8x32xf32, #tpu.memory_space<vmem>>, %arg1: memref<128x32xbf16, #tpu.memory_space<vmem>>, %arg2: memref<32x64xbf16, #tpu.memory_space<vmem>>, %arg3: memref<8x128xf32, #tpu.memory_space<vmem>>, %arg4: memref<1x96xf32, #tpu.memory_space<vmem>>, %arg5: memref<64x128xbf16, #tpu.memory_space<vmem>>, %arg6: memref<16x8xf32, #tpu.memory_space<vmem>>, %arg7: memref<8x32xf32, #tpu.memory_space<vmem>>, %arg8: memref<8x64xbf16, #tpu.memory_space<vmem>>) attributes {dimension_semantics = [], scalar_prefetch = 0 : i64, scratch_operands = 1 : i64, tpu.core_type = #tpu.core_type<tc>} {
    %c0 = arith.constant 0 : index
    %c0_0 = arith.constant 0 : index
    %0 = vector.load %arg0[%c0, %c0_0] : memref<8x32xf32, #tpu.memory_space<vmem>>, vector<8x32xf32>
    %1 = arith.truncf %0 : vector<8x32xf32> to vector<8x32xbf16>
    %c0_1 = arith.constant 0 : index
    %c0_2 = arith.constant 0 : index
    %2 = vector.load %arg1[%c0_1, %c0_2] : memref<128x32xbf16, #tpu.memory_space<vmem>>, vector<128x32xbf16>
    %cst = arith.constant dense<0.000000e+00> : vector<8x128xf32>
    %3 = tpu.matmul %1, %2, %cst {dimension_numbers = #tpu.dot_dimension_numbers<[1], [1], [0], [0], [0, 0, 1, 0], [], []>} : vector<8x32xbf16>, vector<128x32xbf16>, vector<8x128xf32> -> vector<8x128xf32>
    %4 = vector.extract_strided_slice %3 {offsets = [0, 0], sizes = [8, 64], strides = [1, 1]} : vector<8x128xf32> to vector<8x64xf32>
    %5 = vector.extract_strided_slice %3 {offsets = [0, 64], sizes = [8, 32], strides = [1, 1]} : vector<8x128xf32> to vector<8x32xf32>
    %6 = vector.extract_strided_slice %3 {offsets = [0, 96], sizes = [8, 32], strides = [1, 1]} : vector<8x128xf32> to vector<8x32xf32>
    %c0_3 = arith.constant 0 : index
    %c0_4 = arith.constant 0 : index
    %7 = vector.load %arg5[%c0_3, %c0_4] : memref<64x128xbf16, #tpu.memory_space<vmem>>, vector<64x128xbf16>
    %8 = vector.extract_strided_slice %7 {offsets = [0, 0], sizes = [64, 64], strides = [1, 1]} : vector<64x128xbf16> to vector<64x64xbf16>
    %9 = vector.extract_strided_slice %7 {offsets = [0, 64], sizes = [64, 64], strides = [1, 1]} : vector<64x128xbf16> to vector<64x64xbf16>
    %10 = vector.extract_strided_slice %8 {offsets = [0, 0], sizes = [32, 32], strides = [1, 1]} : vector<64x64xbf16> to vector<32x32xbf16>
    %11 = vector.extract_strided_slice %9 {offsets = [0, 0], sizes = [32, 32], strides = [1, 1]} : vector<64x64xbf16> to vector<32x32xbf16>
    %c0_5 = arith.constant 0 : index
    %c0_6 = arith.constant 0 : index
    %12 = vector.load %arg4[%c0_5, %c0_6] : memref<1x96xf32, #tpu.memory_space<vmem>>, vector<1x96xf32>
    %13 = vector.extract_strided_slice %12 {offsets = [0, 0], sizes = [1, 64], strides = [1, 1]} : vector<1x96xf32> to vector<1x64xf32>
    %14 = vector.extract_strided_slice %12 {offsets = [0, 64], sizes = [1, 32], strides = [1, 1]} : vector<1x96xf32> to vector<1x32xf32>
    %15 = arith.mulf %4, %4 : vector<8x64xf32>
    %16 = arith.truncf %15 : vector<8x64xf32> to vector<8x64xbf16>
    %cst_7 = arith.constant dense<0.000000e+00> : vector<8x64xf32>
    %17 = tpu.matmul %16, %8, %cst_7 {dimension_numbers = #tpu.dot_dimension_numbers<[1], [0], [0], [1], [0, 0, 1, 1], [], []>} : vector<8x64xbf16>, vector<64x64xbf16>, vector<8x64xf32> -> vector<8x64xf32>
    %cst_8 = arith.constant 6.250000e-02 : f32
    %18 = vector.broadcast %cst_8 : f32 to vector<8x64xf32>
    %19 = arith.mulf %17, %18 : vector<8x64xf32>
    %cst_9 = arith.constant 9.99999997E-7 : f32
    %20 = vector.broadcast %cst_9 : f32 to vector<8x64xf32>
    %21 = arith.addf %19, %20 : vector<8x64xf32>
    %22 = math.rsqrt %21 : vector<8x64xf32>
    %23 = arith.mulf %4, %22 : vector<8x64xf32>
    %24 = vector.broadcast %13 : vector<1x64xf32> to vector<8x64xf32>
    %25 = arith.mulf %23, %24 : vector<8x64xf32>
    %26 = arith.mulf %5, %5 : vector<8x32xf32>
    %27 = arith.truncf %26 : vector<8x32xf32> to vector<8x32xbf16>
    %cst_10 = arith.constant dense<0.000000e+00> : vector<8x32xf32>
    %28 = tpu.matmul %27, %10, %cst_10 {dimension_numbers = #tpu.dot_dimension_numbers<[1], [0], [0], [1], [0, 0, 1, 1], [], []>} : vector<8x32xbf16>, vector<32x32xbf16>, vector<8x32xf32> -> vector<8x32xf32>
    %cst_11 = arith.constant 6.250000e-02 : f32
    %29 = vector.broadcast %cst_11 : f32 to vector<8x32xf32>
    %30 = arith.mulf %28, %29 : vector<8x32xf32>
    %cst_12 = arith.constant 9.99999997E-7 : f32
    %31 = vector.broadcast %cst_12 : f32 to vector<8x32xf32>
    %32 = arith.addf %30, %31 : vector<8x32xf32>
    %33 = math.rsqrt %32 : vector<8x32xf32>
    %34 = arith.mulf %5, %33 : vector<8x32xf32>
    %35 = vector.broadcast %14 : vector<1x32xf32> to vector<8x32xf32>
    %36 = arith.mulf %34, %35 : vector<8x32xf32>
    %37 = arith.mulf %6, %6 : vector<8x32xf32>
    %38 = arith.truncf %37 : vector<8x32xf32> to vector<8x32xbf16>
    %cst_13 = arith.constant dense<0.000000e+00> : vector<8x32xf32>
    %39 = tpu.matmul %38, %10, %cst_13 {dimension_numbers = #tpu.dot_dimension_numbers<[1], [0], [0], [1], [0, 0, 1, 1], [], []>} : vector<8x32xbf16>, vector<32x32xbf16>, vector<8x32xf32> -> vector<8x32xf32>
    %cst_14 = arith.constant 6.250000e-02 : f32
    %40 = vector.broadcast %cst_14 : f32 to vector<8x32xf32>
    %41 = arith.mulf %39, %40 : vector<8x32xf32>
    %cst_15 = arith.constant 9.99999997E-7 : f32
    %42 = vector.broadcast %cst_15 : f32 to vector<8x32xf32>
    %43 = arith.addf %41, %42 : vector<8x32xf32>
    %44 = math.rsqrt %43 : vector<8x32xf32>
    %45 = arith.mulf %6, %44 : vector<8x32xf32>
    %c0_16 = arith.constant 0 : index
    %c0_17 = arith.constant 0 : index
    %46 = vector.load %arg3[%c0_16, %c0_17] : memref<8x128xf32, #tpu.memory_space<vmem>>, vector<8x128xf32>
    %47 = vector.extract_strided_slice %46 {offsets = [0, 0], sizes = [8, 64], strides = [1, 1]} : vector<8x128xf32> to vector<8x64xf32>
    %48 = vector.extract_strided_slice %46 {offsets = [0, 64], sizes = [8, 64], strides = [1, 1]} : vector<8x128xf32> to vector<8x64xf32>
    %49 = vector.extract_strided_slice %47 {offsets = [0, 0], sizes = [8, 32], strides = [1, 1]} : vector<8x64xf32> to vector<8x32xf32>
    %50 = vector.extract_strided_slice %48 {offsets = [0, 0], sizes = [8, 32], strides = [1, 1]} : vector<8x64xf32> to vector<8x32xf32>
    %51 = arith.truncf %25 : vector<8x64xf32> to vector<8x64xbf16>
    %cst_18 = arith.constant dense<0.000000e+00> : vector<8x64xf32>
    %52 = tpu.matmul %51, %9, %cst_18 {dimension_numbers = #tpu.dot_dimension_numbers<[1], [0], [0], [1], [0, 0, 1, 1], [], []>} : vector<8x64xbf16>, vector<64x64xbf16>, vector<8x64xf32> -> vector<8x64xf32>
    %53 = arith.mulf %25, %47 : vector<8x64xf32>
    %54 = arith.mulf %52, %48 : vector<8x64xf32>
    %55 = arith.addf %53, %54 : vector<8x64xf32>
    %56 = arith.truncf %36 : vector<8x32xf32> to vector<8x32xbf16>
    %cst_19 = arith.constant dense<0.000000e+00> : vector<8x32xf32>
    %57 = tpu.matmul %56, %11, %cst_19 {dimension_numbers = #tpu.dot_dimension_numbers<[1], [0], [0], [1], [0, 0, 1, 1], [], []>} : vector<8x32xbf16>, vector<32x32xbf16>, vector<8x32xf32> -> vector<8x32xf32>
    %58 = arith.mulf %36, %49 : vector<8x32xf32>
    %59 = arith.mulf %57, %50 : vector<8x32xf32>
    %60 = arith.addf %58, %59 : vector<8x32xf32>
    %c0_20 = arith.constant 0 : index
    %c0_21 = arith.constant 0 : index
    %61 = vector.load %arg6[%c0_20, %c0_21] : memref<16x8xf32, #tpu.memory_space<vmem>>, vector<16x8xf32>
    %62 = vector.extract_strided_slice %60 {offsets = [0, 0], sizes = [8, 16], strides = [1, 1]} : vector<8x32xf32> to vector<8x16xf32>
    %63 = arith.truncf %62 : vector<8x16xf32> to vector<8x16xbf16>
    %64 = vector.extract_strided_slice %45 {offsets = [0, 0], sizes = [8, 16], strides = [1, 1]} : vector<8x32xf32> to vector<8x16xf32>
    %65 = arith.truncf %64 : vector<8x16xf32> to vector<8x16xbf16>
    %66 = vector.extract_strided_slice %55 {offsets = [0, 0], sizes = [8, 16], strides = [1, 1]} : vector<8x64xf32> to vector<8x16xf32>
    %67 = vector.extract_strided_slice %55 {offsets = [0, 16], sizes = [8, 16], strides = [1, 1]} : vector<8x64xf32> to vector<8x16xf32>
    %68 = tpu.concatenate %66, %67 in 0 : vector<8x16xf32>, vector<8x16xf32> -> vector<16x16xf32>
    %69 = arith.truncf %68 : vector<16x16xf32> to vector<16x16xbf16>
    %cst_22 = arith.constant dense<0.000000e+00> : vector<16x8xf32>
    %70 = tpu.matmul %69, %63, %cst_22 {dimension_numbers = #tpu.dot_dimension_numbers<[1], [1], [0], [0], [0, 0, 1, 0], [], []>} : vector<16x16xbf16>, vector<8x16xbf16>, vector<16x8xf32> -> vector<16x8xf32>
    %71 = arith.addf %70, %61 : vector<16x8xf32>
    %cst_23 = arith.constant dense<0xFF800000> : vector<16xf32>
    %72 = vector.multi_reduction <maximumf>, %71, %cst_23 [1] : vector<16x8xf32> to vector<16xf32>
    %73 = vector.shape_cast %72 : vector<16xf32> to vector<16x1xf32>
    %74 = vector.broadcast %73 : vector<16x1xf32> to vector<16x8xf32>
    %75 = arith.subf %71, %74 : vector<16x8xf32>
    %76 = math.exp %75 : vector<16x8xf32>
    %cst_24 = arith.constant dense<0.000000e+00> : vector<16xf32>
    %77 = vector.multi_reduction <add>, %76, %cst_24 [1] : vector<16x8xf32> to vector<16xf32>
    %78 = vector.shape_cast %77 : vector<16xf32> to vector<16x1xf32>
    %79 = arith.truncf %76 : vector<16x8xf32> to vector<16x8xbf16>
    %cst_25 = arith.constant dense<0.000000e+00> : vector<16x16xf32>
    %80 = tpu.matmul %79, %65, %cst_25 {dimension_numbers = #tpu.dot_dimension_numbers<[1], [0], [0], [1], [0, 0, 1, 1], [], []>} : vector<16x8xbf16>, vector<8x16xbf16>, vector<16x16xf32> -> vector<16x16xf32>
    %81 = tpu.reciprocal %78 {approx = true} : vector<16x1xf32> -> vector<16x1xf32>
    %82 = vector.broadcast %81 : vector<16x1xf32> to vector<16x16xf32>
    %83 = arith.mulf %80, %82 : vector<16x16xf32>
    %84 = arith.truncf %83 : vector<16x16xf32> to vector<16x16xbf16>
    %85 = vector.extract_strided_slice %84 {offsets = [0, 0], sizes = [8, 16], strides = [1, 1]} : vector<16x16xbf16> to vector<8x16xbf16>
    %c0_26 = arith.constant 0 : index
    %c0_27 = arith.constant 0 : index
    %86 = vector.load %arg8[%c0_26, %c0_27] : memref<8x64xbf16, #tpu.memory_space<vmem>>, vector<8x16xbf16>
    tpu.vector_store %arg8[%c0_26, %c0_27], %85 {strides = array<i32>} : memref<8x64xbf16, #tpu.memory_space<vmem>>, vector<8x16xbf16>,
    %87 = vector.extract_strided_slice %84 {offsets = [8, 0], sizes = [8, 16], strides = [1, 1]} : vector<16x16xbf16> to vector<8x16xbf16>
    %c0_28 = arith.constant 0 : index
    %c16 = arith.constant 16 : index
    %88 = vector.load %arg8[%c0_28, %c16] : memref<8x64xbf16, #tpu.memory_space<vmem>>, vector<8x16xbf16>
    tpu.vector_store %arg8[%c0_28, %c16], %87 {strides = array<i32>} : memref<8x64xbf16, #tpu.memory_space<vmem>>, vector<8x16xbf16>,
    %89 = vector.extract_strided_slice %60 {offsets = [0, 16], sizes = [8, 16], strides = [1, 1]} : vector<8x32xf32> to vector<8x16xf32>
    %90 = arith.truncf %89 : vector<8x16xf32> to vector<8x16xbf16>
    %91 = vector.extract_strided_slice %45 {offsets = [0, 16], sizes = [8, 16], strides = [1, 1]} : vector<8x32xf32> to vector<8x16xf32>
    %92 = arith.truncf %91 : vector<8x16xf32> to vector<8x16xbf16>
    %93 = vector.extract_strided_slice %55 {offsets = [0, 32], sizes = [8, 16], strides = [1, 1]} : vector<8x64xf32> to vector<8x16xf32>
    %94 = vector.extract_strided_slice %55 {offsets = [0, 48], sizes = [8, 16], strides = [1, 1]} : vector<8x64xf32> to vector<8x16xf32>
    %95 = tpu.concatenate %93, %94 in 0 : vector<8x16xf32>, vector<8x16xf32> -> vector<16x16xf32>
    %96 = arith.truncf %95 : vector<16x16xf32> to vector<16x16xbf16>
    %cst_29 = arith.constant dense<0.000000e+00> : vector<16x8xf32>
    %97 = tpu.matmul %96, %90, %cst_29 {dimension_numbers = #tpu.dot_dimension_numbers<[1], [1], [0], [0], [0, 0, 1, 0], [], []>} : vector<16x16xbf16>, vector<8x16xbf16>, vector<16x8xf32> -> vector<16x8xf32>
    %98 = arith.addf %97, %61 : vector<16x8xf32>
    %cst_30 = arith.constant dense<0xFF800000> : vector<16xf32>
    %99 = vector.multi_reduction <maximumf>, %98, %cst_30 [1] : vector<16x8xf32> to vector<16xf32>
    %100 = vector.shape_cast %99 : vector<16xf32> to vector<16x1xf32>
    %101 = vector.broadcast %100 : vector<16x1xf32> to vector<16x8xf32>
    %102 = arith.subf %98, %101 : vector<16x8xf32>
    %103 = math.exp %102 : vector<16x8xf32>
    %cst_31 = arith.constant dense<0.000000e+00> : vector<16xf32>
    %104 = vector.multi_reduction <add>, %103, %cst_31 [1] : vector<16x8xf32> to vector<16xf32>
    %105 = vector.shape_cast %104 : vector<16xf32> to vector<16x1xf32>
    %106 = arith.truncf %103 : vector<16x8xf32> to vector<16x8xbf16>
    %cst_32 = arith.constant dense<0.000000e+00> : vector<16x16xf32>
    %107 = tpu.matmul %106, %92, %cst_32 {dimension_numbers = #tpu.dot_dimension_numbers<[1], [0], [0], [1], [0, 0, 1, 1], [], []>} : vector<16x8xbf16>, vector<8x16xbf16>, vector<16x16xf32> -> vector<16x16xf32>
    %108 = tpu.reciprocal %105 {approx = true} : vector<16x1xf32> -> vector<16x1xf32>
    %109 = vector.broadcast %108 : vector<16x1xf32> to vector<16x16xf32>
    %110 = arith.mulf %107, %109 : vector<16x16xf32>
    %111 = arith.truncf %110 : vector<16x16xf32> to vector<16x16xbf16>
    %112 = vector.extract_strided_slice %111 {offsets = [0, 0], sizes = [8, 16], strides = [1, 1]} : vector<16x16xbf16> to vector<8x16xbf16>
    %c0_33 = arith.constant 0 : index
    %c32 = arith.constant 32 : index
    %113 = vector.load %arg8[%c0_33, %c32] : memref<8x64xbf16, #tpu.memory_space<vmem>>, vector<8x16xbf16>
    tpu.vector_store %arg8[%c0_33, %c32], %112 {strides = array<i32>} : memref<8x64xbf16, #tpu.memory_space<vmem>>, vector<8x16xbf16>,
    %114 = vector.extract_strided_slice %111 {offsets = [8, 0], sizes = [8, 16], strides = [1, 1]} : vector<16x16xbf16> to vector<8x16xbf16>
    %c0_34 = arith.constant 0 : index
    %c48 = arith.constant 48 : index
    %115 = vector.load %arg8[%c0_34, %c48] : memref<8x64xbf16, #tpu.memory_space<vmem>>, vector<8x16xbf16>
    tpu.vector_store %arg8[%c0_34, %c48], %114 {strides = array<i32>} : memref<8x64xbf16, #tpu.memory_space<vmem>>, vector<8x16xbf16>,
    %c0_35 = arith.constant 0 : index
    %c0_36 = arith.constant 0 : index
    %116 = vector.load %arg8[%c0_35, %c0_36] : memref<8x64xbf16, #tpu.memory_space<vmem>>, vector<8x64xbf16>
    %c0_37 = arith.constant 0 : index
    %c0_38 = arith.constant 0 : index
    %117 = vector.load %arg2[%c0_37, %c0_38] : memref<32x64xbf16, #tpu.memory_space<vmem>>, vector<32x64xbf16>
    %cst_39 = arith.constant dense<0.000000e+00> : vector<8x32xf32>
    %118 = tpu.matmul %116, %117, %cst_39 {dimension_numbers = #tpu.dot_dimension_numbers<[1], [1], [0], [0], [0, 0, 1, 0], [], []>} : vector<8x64xbf16>, vector<32x64xbf16>, vector<8x32xf32> -> vector<8x32xf32>
    %c0_40 = arith.constant 0 : index
    %c0_41 = arith.constant 0 : index
    %119 = vector.load %arg7[%c0_40, %c0_41] : memref<8x32xf32, #tpu.memory_space<vmem>>, vector<8x32xf32>
    tpu.vector_store %arg7[%c0_40, %c0_41], %118 {strides = array<i32>} : memref<8x32xf32, #tpu.memory_space<vmem>>, vector<8x32xf32>,
    return
  }
}

</mosaic_0001>

<llo_original>
// kernel: tile.24
$region0: #{tile.24}
  %s0 = inlined_call_operand.vmem [shape: f32[8,4,16], index: 0, kind: input, shape index: {}]
  %s1 = inlined_call_operand.vmem [shape: f32[8,64], index: 1, kind: output, shape index: {}]
  $region1: #{tile.24} parent=0
    #allocation0 [shape = 'u8[32768]{0}', space=vmem, size = 0x8000, scoped, tag = 'scoped mem for input reshape']
    %s3 = sshllo.u32 0, 4
    %s4 = smul.addr 4, 7
    %s5 = scalar_lea.vmem %s0, %s4
    %v6 = vld [vmem:[%s5] sm:%s3]
    %s7 = scalar_lea.vmem [#allocation0], 56
    %8 = vst [vmem:[%s7] sm:%s3] %v6
    %s9 = smul.addr 4, 6
    %s10 = scalar_lea.vmem %s0, %s9
    %v11 = vld [vmem:[%s10] sm:%s3]
    %s12 = scalar_lea.vmem [#allocation0], 48
    %13 = vst [vmem:[%s12] sm:%s3] %v11
    %s14 = smul.addr 4, 5
    %s15 = scalar_lea.vmem %s0, %s14
    %v16 = vld [vmem:[%s15] sm:%s3]
    %s17 = scalar_lea.vmem [#allocation0], 40
    %18 = vst [vmem:[%s17] sm:%s3] %v16
    %s19 = smul.addr 4, 4
    %s20 = scalar_lea.vmem %s0, %s19
    %v21 = vld [vmem:[%s20] sm:%s3]
    %s22 = scalar_lea.vmem [#allocation0], 32
    %23 = vst [vmem:[%s22] sm:%s3] %v21
    %s24 = smul.addr 4, 3
    %s25 = scalar_lea.vmem %s0, %s24
    %v26 = vld [vmem:[%s25] sm:%s3]
    %s27 = scalar_lea.vmem [#allocation0], 24
    %28 = vst [vmem:[%s27] sm:%s3] %v26
    %s29 = smul.addr 4, 2
    %s30 = scalar_lea.vmem %s0, %s29
    %v31 = vld [vmem:[%s30] sm:%s3]
    %s32 = scalar_lea.vmem [#allocation0], 16
    %33 = vst [vmem:[%s32] sm:%s3] %v31
    %s34 = scalar_lea.vmem %s0, 4
    %v35 = vld [vmem:[%s34] sm:%s3]
    %s36 = scalar_lea.vmem [#allocation0], 8
    %37 = vst [vmem:[%s36] sm:%s3] %v35
    %v38 = vld [vmem:[%s0] sm:%s3]
    %39 = vst [vmem:[#allocation0] sm:%s3] %v38
    %v40 = vld [vmem:[#allocation0] ss:$8 sm:$0xf]
    %v41 = vld [vmem:[#allocation0] ss:$8 sm:$0xf0]
    %vm42 = vcmask 1047556
    %v43 = vsel %vm42, %v41, %v40
    %vm44 = vcmask 130048
    %45 = vst.msk [vmem:[%s1] sm:$0xff] %vm44, %v43
    %s46 = scalar_lea.vmem [#allocation0], 3
    %v47 = vld [vmem:[%s46] ss:$8 sm:$0xf]
    %s48 = scalar_lea.vmem [#allocation0], 3
    %v49 = vld [vmem:[%s48] ss:$8 sm:$0xf0]
    %vm50 = vcmask 1047556
    %v51 = vsel %vm50, %v49, %v47
    %52 = vrot.lane.b32.xlu0 %v51, 48
    %v53 = vpop.permute.xlu0 %52
    %vm54 = vcmask 523648
    %55 = vst.msk [vmem:[%s1] sm:$0xff] %vm54, %v53
    %s56 = scalar_lea.vmem [#allocation0], 2
    %v57 = vld [vmem:[%s56] ss:$8 sm:$0xf]
    %s58 = scalar_lea.vmem [#allocation0], 2
    %v59 = vld [vmem:[%s58] ss:$8 sm:$0xf0]
    %vm60 = vcmask 1047556
    %v61 = vsel %vm60, %v59, %v57
    %62 = vrot.lane.b32.xlu0 %v61, 32
    %v63 = vpop.permute.xlu0 %62
    %vm64 = vcmask 392448
    %65 = vst.msk [vmem:[%s1] sm:$0xff] %vm64, %v63
    %s66 = scalar_lea.vmem [#allocation0], 1
    %v67 = vld [vmem:[%s66] ss:$8 sm:$0xf]
    %s68 = scalar_lea.vmem [#allocation0], 1
    %v69 = vld [vmem:[%s68] ss:$8 sm:$0xf0]
    %vm70 = vcmask 1047556
    %v71 = vsel %vm70, %v69, %v67
    %72 = vrot.lane.b32.xlu0 %v71, 16
    %v73 = vpop.permute.xlu0 %72
    %vm74 = vcmask 261248
    %75 = vst.msk [vmem:[%s1] sm:$0xff] %vm74, %v73

// kernel: gemma3n_attention_forward.1
$region0: #{gemma3n_attention_forward.1}
  #allocation0 [shape = 'u32[]', space=smem, size = 0x4, offset = 0x4, fixed_abs, tag = 'smem constant byte address 0x4 - core index']
  #allocation1 [shape = 'u32[144,128]{1,0:T(1,128)}', space=vmem, size = 0x12000, scoped, tag = 'internal scratch']
  #allocation2 [shape = 'bf16[8,64]{1,0:T(8,128)(2,1)}', space=vmem, size = 0x800, scoped, tag = 'scratch operand']
  %s0 = inlined_call_operand.vmem [shape: f32[8,32], index: 0, kind: input, shape index: {}]
  %s1 = inlined_call_operand.vmem [shape: bf16[128,32], index: 1, kind: input, shape index: {}]
  %s2 = inlined_call_operand.vmem [shape: bf16[32,64], index: 2, kind: input, shape index: {}]
  %s3 = inlined_call_operand.vmem [shape: f32[8,128], index: 3, kind: input, shape index: {}]
  %s4 = inlined_call_operand.vmem [shape: f32[1,96], index: 4, kind: input, shape index: {}]
  %s5 = inlined_call_operand.vmem [shape: bf16[64,128], index: 5, kind: input, shape index: {}]
  %s6 = inlined_call_operand.vmem [shape: f32[16,8], index: 6, kind: input, shape index: {}]
  %s7 = inlined_call_operand.hbm [shape: f32[8,32], index: 7, kind: output, shape index: {}]
  %s8 = sld [smem:[#allocation0]]
  $region38: #{gemma3n_attention_forward.1} parent=0
    _
  %s10 = ssub.s32 1, %s8
  %s11 = scalar_select 0, %s10, %s8
  $region1: #{gemma3n_attention_forward.1} parent=0
    #allocation3 [shape = 'u8[4096]{0}', space=vmem, size = 0x1000, scoped, tag = 'output window, operand 0, single buffered']
    #allocation4 [shape = 's32[1]{0}', space=sflag, size = 0x4, scoped, tag = 'scoped memory for gemma3n_attention_forward.1']
    %12 = vsyncpa [#allocation4], 0
    // Predicated region
    $region2: #{gemma3n_attention_forward.1} parent=1 // pred_check
      _
    $region3: #{gemma3n_attention_forward.1} parent=1 // pred_check_branch
      %14 = sbr.rel (0) target = $region5
    $region4: #{gemma3n_attention_forward.1} parent=1 // pred_region
      _
    $region5: #{gemma3n_attention_forward.1} parent=1 // pred_fallthru
      _
    // Predicated region
    $region6: #{gemma3n_attention_forward.1} parent=1 // pred_check
      _
    $region7: #{gemma3n_attention_forward.1} parent=1 // pred_check_branch
      %16 = sbr.rel (0) target = $region9
    $region8: #{gemma3n_attention_forward.1} parent=1 // pred_region
      _
    $region9: #{gemma3n_attention_forward.1} parent=1 // pred_fallthru
      _
    // Predicated region
    $region10: #{gemma3n_attention_forward.1} parent=1 // pred_check
      _
    $region11: #{gemma3n_attention_forward.1} parent=1 // pred_check_branch
      %18 = sbr.rel (0) target = $region13
    $region12: #{gemma3n_attention_forward.1} parent=1 // pred_region
      _
    $region13: #{gemma3n_attention_forward.1} parent=1 // pred_fallthru
      _
    // Predicated region
    $region14: #{gemma3n_attention_forward.1} parent=1 // pred_check
      _
    $region15: #{gemma3n_attention_forward.1} parent=1 // pred_check_branch
      %20 = sbr.rel (0) target = $region17
    $region16: #{gemma3n_attention_forward.1} parent=1 // pred_region
      _
    $region17: #{gemma3n_attention_forward.1} parent=1 // pred_fallthru
      _
    // Predicated region
    $region18: #{gemma3n_attention_forward.1} parent=1 // pred_check
      _
    $region19: #{gemma3n_attention_forward.1} parent=1 // pred_check_branch
      %22 = sbr.rel (0) target = $region21
    $region20: #{gemma3n_attention_forward.1} parent=1 // pred_region
      _
    $region21: #{gemma3n_attention_forward.1} parent=1 // pred_fallthru
      _
    // Predicated region
    $region22: #{gemma3n_attention_forward.1} parent=1 // pred_check
      _
    $region23: #{gemma3n_attention_forward.1} parent=1 // pred_check_branch
      %24 = sbr.rel (0) target = $region25
    $region24: #{gemma3n_attention_forward.1} parent=1 // pred_region
      _
    $region25: #{gemma3n_attention_forward.1} parent=1 // pred_fallthru
      _
    // Predicated region
    $region26: #{gemma3n_attention_forward.1} parent=1 // pred_check
      _
    $region27: #{gemma3n_attention_forward.1} parent=1 // pred_check_branch
      %26 = sbr.rel (0) target = $region29
    $region28: #{gemma3n_attention_forward.1} parent=1 // pred_region
      _
    $region29: #{gemma3n_attention_forward.1} parent=1 // pred_fallthru
      _
    %v28 = vld [vmem:[%s0] sm:$0xff]
    %v29 = vpack.c.bf16 %v28, %v28
    %v30 = vld [vmem:[%s1] sm:$0xf]
    %v31 = vld [vmem:[%s1 + $0x4] sm:$0xf]
    %v32 = vld [vmem:[%s1 + $0x8] sm:$0xf]
    %v33 = vld [vmem:[%s1 + $0xc] sm:$0xf]
    %v34 = vld [vmem:[%s1 + $0x10] sm:$0xf]
    %v35 = vld [vmem:[%s1 + $0x14] sm:$0xf]
    %v36 = vld [vmem:[%s1 + $0x18] sm:$0xf]
    %v37 = vld [vmem:[%s1 + $0x1c] sm:$0xf]
    %v38 = vld [vmem:[%s1 + $0x20] sm:$0xf]
    %v39 = vld [vmem:[%s1 + $0x24] sm:$0xf]
    %v40 = vld [vmem:[%s1 + $0x28] sm:$0xf]
    %v41 = vld [vmem:[%s1 + $0x2c] sm:$0xf]
    %v42 = vld [vmem:[%s1 + $0x30] sm:$0xf]
    %v43 = vld [vmem:[%s1 + $0x34] sm:$0xf]
    %v44 = vld [vmem:[%s1 + $0x38] sm:$0xf]
    %v45 = vld [vmem:[%s1 + $0x3c] sm:$0xf]
    %v62 = vunpack.c.l.b16 %v30
    %v63 = vunpack.c.l.b16 %v31
    %v64 = vunpack.c.l.b16 %v32
    %v65 = vunpack.c.l.b16 %v33
    %v66 = vunpack.c.l.b16 %v34
    %v67 = vunpack.c.l.b16 %v35
    %v68 = vunpack.c.l.b16 %v36
    %v69 = vunpack.c.l.b16 %v37
    %v70 = vunpack.c.l.b16 %v38
    %v71 = vunpack.c.l.b16 %v39
    %v72 = vunpack.c.l.b16 %v40
    %v73 = vunpack.c.l.b16 %v41
    %v74 = vunpack.c.l.b16 %v42
    %v75 = vunpack.c.l.b16 %v43
    %v76 = vunpack.c.l.b16 %v44
    %v77 = vunpack.c.l.b16 %v45
    %v78 = vpack.c.b16 %v63, %v62
    %v79 = vpack.c.b16 %v65, %v64
    %v80 = vpack.c.b16 %v67, %v66
    %v81 = vpack.c.b16 %v69, %v68
    %v82 = vpack.c.b16 %v71, %v70
    %v83 = vpack.c.b16 %v73, %v72
    %v84 = vpack.c.b16 %v75, %v74
    %v85 = vpack.c.b16 %v77, %v76
    %vm86 = vcmask 261120
    %v88 = vsel %vm86, %v29, 0
    %v91 = vsel %vm86, %v78, 0
    %v94 = vsel %vm86, %v79, 0
    %v97 = vsel %vm86, %v80, 0
    %v100 = vsel %vm86, %v81, 0
    %v103 = vsel %vm86, %v82, 0
    %v106 = vsel %vm86, %v83, 0
    %v109 = vsel %vm86, %v84, 0
    %v112 = vsel %vm86, %v85, 0
    %114 = vmatprep.subr.bf16.mxu0 0
    %115 = vmatpush1.bf16.xpose.msra.mxu0 %v91
    %116 = vmatprep.subr.bf16.mxu0 0
    %117 = vmatpush1.bf16.xpose.msra.mxu0 %v94
    %118 = vmatprep.subr.bf16.mxu0 0
    %119 = vmatpush1.bf16.xpose.msra.mxu0 %v97
    %120 = vmatprep.subr.bf16.mxu0 0
    %121 = vmatpush1.bf16.xpose.msra.mxu0 %v100
    %122 = vmatprep.subr.bf16.mxu0 0
    %123 = vmatpush1.bf16.xpose.msra.mxu0 %v103
    %124 = vmatprep.subr.bf16.mxu0 0
    %125 = vmatpush1.bf16.xpose.msra.mxu0 %v106
    %126 = vmatprep.subr.bf16.mxu0 0
    %127 = vmatpush1.bf16.xpose.msra.mxu0 %v109
    %128 = vmatprep.subr.bf16.mxu0 0
    %129 = vmatpush1.bf16.xpose.msra.mxu0 %v112
    %130 = vmatprep.subr.bf16.mxu0 0
    %131 = vmatpush1.bf16.xpose.msra.mxu0 0
    %132 = vmatprep.subr.bf16.mxu0 0
    %133 = vmatpush1.bf16.xpose.msra.mxu0 0
    %134 = vmatprep.subr.bf16.mxu0 0
    %135 = vmatpush1.bf16.xpose.msra.mxu0 0
    %136 = vmatprep.subr.bf16.mxu0 0
    %137 = vmatpush1.bf16.xpose.msra.mxu0 0
    %138 = vmatprep.subr.bf16.mxu0 0
    %139 = vmatpush1.bf16.xpose.msra.mxu0 0
    %140 = vmatprep.subr.bf16.mxu0 0
    %141 = vmatpush1.bf16.xpose.msra.mxu0 0
    %142 = vmatprep.subr.bf16.mxu0 0
    %143 = vmatpush1.bf16.xpose.msra.mxu0 0
    %144 = vmatprep.subr.bf16.mxu0 0
    %145 = vmatpush1.bf16.xpose.msra.mxu0 0
    %146 = vmatprep.mubr.bf16.mxu0 0
    %147 = vmatmul.mubr.bf16.gmra.mrb[0].mxu0 %v88
    %v148 = vpop.f32.mrb[0].mxu0
    %v149 = vadd.f32 0.0, %v148
    %v150 = vpop.f32.mrb[0].mxu0
    %v151 = vpop.f32.mrb[0].mxu0
    %v152 = vpop.f32.mrb[0].mxu0
    %153 = vdwg.mxu0
    %v154 = vld [vmem:[%s5] sm:$0xf]
    %v155 = vld [vmem:[%s5 + $0x4] sm:$0xf]
    %v156 = vld [vmem:[%s5 + $0x8] sm:$0xf]
    %v157 = vld [vmem:[%s5 + $0xc] sm:$0xf]
    %v158 = vld [vmem:[%s5 + $0x10] sm:$0xf]
    %v159 = vld [vmem:[%s5 + $0x14] sm:$0xf]
    %v160 = vld [vmem:[%s5 + $0x18] sm:$0xf]
    %v161 = vld [vmem:[%s5 + $0x1c] sm:$0xf]
    %v162 = vld [vmem:[%s4] sm:$0x1]
    %v163 = vmul.f32 %v149, %v149
    %v164 = vpack.c.bf16 %v163, %v163
    %v173 = vunpack.c.l.b16 %v154
    %v174 = vunpack.c.l.b16 %v155
    %v175 = vunpack.c.l.b16 %v156
    %v176 = vunpack.c.l.b16 %v157
    %v177 = vunpack.c.l.b16 %v158
    %v178 = vunpack.c.l.b16 %v159
    %v179 = vunpack.c.l.b16 %v160
    %v180 = vunpack.c.l.b16 %v161
    %v181 = vpack.c.b16 %v174, %v173
    %v182 = vpack.c.b16 %v176, %v175
    %v183 = vpack.c.b16 %v178, %v177
    %v184 = vpack.c.b16 %v180, %v179
    %vm189 = vcmask 523264
    %v191 = vsel %vm189, %v164, 0
    %193 = vmatprep.subr.bf16.mxu0 0
    %194 = vmatpush1.bf16.msra.mxu0 %v181
    %195 = vmatprep.subr.bf16.mxu0 0
    %196 = vmatpush1.bf16.msra.mxu0 %v182
    %197 = vmatprep.subr.bf16.mxu0 0
    %198 = vmatpush1.bf16.msra.mxu0 %v183
    %199 = vmatprep.subr.bf16.mxu0 0
    %200 = vmatpush1.bf16.msra.mxu0 %v184
    %201 = vmatprep.subr.bf16.mxu0 0
    %202 = vmatpush1.bf16.msra.mxu0 0
    %203 = vmatprep.subr.bf16.mxu0 0
    %204 = vmatpush1.bf16.msra.mxu0 0
    %205 = vmatprep.subr.bf16.mxu0 0
    %206 = vmatpush1.bf16.msra.mxu0 0
    %207 = vmatprep.subr.bf16.mxu0 0
    %208 = vmatpush1.bf16.msra.mxu0 0
    %209 = vmatprep.subr.bf16.mxu0 0
    %210 = vmatpush1.bf16.msra.mxu0 0
    %211 = vmatprep.subr.bf16.mxu0 0
    %212 = vmatpush1.bf16.msra.mxu0 0
    %213 = vmatprep.subr.bf16.mxu0 0
    %214 = vmatpush1.bf16.msra.mxu0 0
    %215 = vmatprep.subr.bf16.mxu0 0
    %216 = vmatpush1.bf16.msra.mxu0 0
    %217 = vmatprep.subr.bf16.mxu0 0
    %218 = vmatpush1.bf16.msra.mxu0 0
    %219 = vmatprep.subr.bf16.mxu0 0
    %220 = vmatpush1.bf16.msra.mxu0 0
    %221 = vmatprep.subr.bf16.mxu0 0
    %222 = vmatpush1.bf16.msra.mxu0 0
    %223 = vmatprep.subr.bf16.mxu0 0
    %224 = vmatpush1.bf16.msra.mxu0 0
    %225 = vmatprep.mubr.bf16.mxu0 0
    %226 = vmatmul.mubr.bf16.gmra.mrb[0].mxu0 %v191
    %v227 = vpop.f32.mrb[0].mxu0
    %v228 = vadd.f32 0.0, %v227
    %v229 = vpop.f32.mrb[0].mxu0
    %v230 = vpop.f32.mrb[0].mxu0
    %v231 = vpop.f32.mrb[0].mxu0
    %232 = vdwg.mxu0
    %v233 = vmul.f32 %v228, 0.0625
    %v234 = vadd.f32 %v233, 1e-06
    %v235 = vrsqrt.pop %v234
    %v236 = vmul.f32 %v149, %v235
    %v238 = vlaneseq
    %v239 = vshrl.u32 %v238, 7
    %v240 = vsub.s32 0, %v239
    %v241 = vrot.slane %v162, %v240
    %v243 = vmul.f32 %v236, %v241
    %245 = vrot.lane.b32.xlu0 %v164, 64
    %v246 = vpop.permute.xlu0 %245
    %v248 = vsel %vm86, %v246, 0
    %250 = vmatprep.subr.bf16.mxu0 0
    %251 = vmatpush1.bf16.msra.mxu0 %v181
    %252 = vmatprep.subr.bf16.mxu0 0
    %253 = vmatpush1.bf16.msra.mxu0 %v182
    %254 = vmatprep.subr.bf16.mxu0 0
    %255 = vmatpush1.bf16.msra.mxu0 0
    %256 = vmatprep.subr.bf16.mxu0 0
    %257 = vmatpush1.bf16.msra.mxu0 0
    %258 = vmatprep.subr.bf16.mxu0 0
    %259 = vmatpush1.bf16.msra.mxu0 0
    %260 = vmatprep.subr.bf16.mxu0 0
    %261 = vmatpush1.bf16.msra.mxu0 0
    %262 = vmatprep.subr.bf16.mxu0 0
    %263 = vmatpush1.bf16.msra.mxu0 0
    %264 = vmatprep.subr.bf16.mxu0 0
    %265 = vmatpush1.bf16.msra.mxu0 0
    %266 = vmatprep.subr.bf16.mxu0 0
    %267 = vmatpush1.bf16.msra.mxu0 0
    %268 = vmatprep.subr.bf16.mxu0 0
    %269 = vmatpush1.bf16.msra.mxu0 0
    %270 = vmatprep.subr.bf16.mxu0 0
    %271 = vmatpush1.bf16.msra.mxu0 0
    %272 = vmatprep.subr.bf16.mxu0 0
    %273 = vmatpush1.bf16.msra.mxu0 0
    %274 = vmatprep.subr.bf16.mxu0 0
    %275 = vmatpush1.bf16.msra.mxu0 0
    %276 = vmatprep.subr.bf16.mxu0 0
    %277 = vmatpush1.bf16.msra.mxu0 0
    %278 = vmatprep.subr.bf16.mxu0 0
    %279 = vmatpush1.bf16.msra.mxu0 0
    %280 = vmatprep.subr.bf16.mxu0 0
    %281 = vmatpush1.bf16.msra.mxu0 0
    %282 = vmatprep.mubr.bf16.mxu0 0
    %283 = vmatmul.mubr.bf16.gmra.mrb[0].mxu0 %v248
    %v284 = vpop.f32.mrb[0].mxu0
    %v285 = vadd.f32 0.0, %v284
    %v286 = vpop.f32.mrb[0].mxu0
    %v287 = vpop.f32.mrb[0].mxu0
    %v288 = vpop.f32.mrb[0].mxu0
    %289 = vdwg.mxu0
    %v290 = vmul.f32 %v285, 0.0625
    %v291 = vadd.f32 %v290, 1e-06
    %v292 = vrsqrt.pop %v291
    %294 = vrot.lane.b32.xlu0 %v292, 64
    %v295 = vpop.permute.xlu0 %294
    %v297 = vmul.f32 %v149, %v295
    %v298 = vmul.f32 %v297, %v241
    %299 = vrot.lane.b32.xlu0 %v164, 32
    %v300 = vpop.permute.xlu0 %299
    %v302 = vsel %vm86, %v300, 0
    %304 = vmatprep.subr.bf16.mxu0 0
    %305 = vmatpush1.bf16.msra.mxu0 %v181
    %306 = vmatprep.subr.bf16.mxu0 0
    %307 = vmatpush1.bf16.msra.mxu0 %v182
    %308 = vmatprep.subr.bf16.mxu0 0
    %309 = vmatpush1.bf16.msra.mxu0 0
    %310 = vmatprep.subr.bf16.mxu0 0
    %311 = vmatpush1.bf16.msra.mxu0 0
    %312 = vmatprep.subr.bf16.mxu0 0
    %313 = vmatpush1.bf16.msra.mxu0 0
    %314 = vmatprep.subr.bf16.mxu0 0
    %315 = vmatpush1.bf16.msra.mxu0 0
    %316 = vmatprep.subr.bf16.mxu0 0
    %317 = vmatpush1.bf16.msra.mxu0 0
    %318 = vmatprep.subr.bf16.mxu0 0
    %319 = vmatpush1.bf16.msra.mxu0 0
    %320 = vmatprep.subr.bf16.mxu0 0
    %321 = vmatpush1.bf16.msra.mxu0 0
    %322 = vmatprep.subr.bf16.mxu0 0
    %323 = vmatpush1.bf16.msra.mxu0 0
    %324 = vmatprep.subr.bf16.mxu0 0
    %325 = vmatpush1.bf16.msra.mxu0 0
    %326 = vmatprep.subr.bf16.mxu0 0
    %327 = vmatpush1.bf16.msra.mxu0 0
    %328 = vmatprep.subr.bf16.mxu0 0
    %329 = vmatpush1.bf16.msra.mxu0 0
    %330 = vmatprep.subr.bf16.mxu0 0
    %331 = vmatpush1.bf16.msra.mxu0 0
    %332 = vmatprep.subr.bf16.mxu0 0
    %333 = vmatpush1.bf16.msra.mxu0 0
    %334 = vmatprep.subr.bf16.mxu0 0
    %335 = vmatpush1.bf16.msra.mxu0 0
    %336 = vmatprep.mubr.bf16.mxu0 0
    %337 = vmatmul.mubr.bf16.gmra.mrb[0].mxu0 %v302
    %v338 = vpop.f32.mrb[0].mxu0
    %v339 = vadd.f32 0.0, %v338
    %v340 = vpop.f32.mrb[0].mxu0
    %v341 = vpop.f32.mrb[0].mxu0
    %v342 = vpop.f32.mrb[0].mxu0
    %343 = vdwg.mxu0
    %v344 = vmul.f32 %v339, 0.0625
    %v345 = vadd.f32 %v344, 1e-06
    %v346 = vrsqrt.pop %v345
    %348 = vrot.lane.b32.xlu0 %v346, 96
    %v349 = vpop.permute.xlu0 %348
    %v351 = vmul.f32 %v149, %v349
    %v352 = vld [vmem:[%s3] sm:$0xff]
    %v353 = vpack.c.bf16 %v243, %v243
    %354 = vrot.lane.b32.xlu0 %v181, 64
    %v355 = vpop.permute.xlu0 %354
    %356 = vrot.lane.b32.xlu0 %v182, 64
    %v357 = vpop.permute.xlu0 %356
    %358 = vrot.lane.b32.xlu0 %v183, 64
    %v359 = vpop.permute.xlu0 %358
    %360 = vrot.lane.b32.xlu0 %v184, 64
    %v361 = vpop.permute.xlu0 %360
    %v367 = vsel %vm189, %v353, 0
    %369 = vmatprep.subr.bf16.mxu0 0
    %370 = vmatpush1.bf16.msra.mxu0 %v355
    %371 = vmatprep.subr.bf16.mxu0 0
    %372 = vmatpush1.bf16.msra.mxu0 %v357
    %373 = vmatprep.subr.bf16.mxu0 0
    %374 = vmatpush1.bf16.msra.mxu0 %v359
    %375 = vmatprep.subr.bf16.mxu0 0
    %376 = vmatpush1.bf16.msra.mxu0 %v361
    %377 = vmatprep.subr.bf16.mxu0 0
    %378 = vmatpush1.bf16.msra.mxu0 0
    %379 = vmatprep.subr.bf16.mxu0 0
    %380 = vmatpush1.bf16.msra.mxu0 0
    %381 = vmatprep.subr.bf16.mxu0 0
    %382 = vmatpush1.bf16.msra.mxu0 0
    %383 = vmatprep.subr.bf16.mxu0 0
    %384 = vmatpush1.bf16.msra.mxu0 0
    %385 = vmatprep.subr.bf16.mxu0 0
    %386 = vmatpush1.bf16.msra.mxu0 0
    %387 = vmatprep.subr.bf16.mxu0 0
    %388 = vmatpush1.bf16.msra.mxu0 0
    %389 = vmatprep.subr.bf16.mxu0 0
    %390 = vmatpush1.bf16.msra.mxu0 0
    %391 = vmatprep.subr.bf16.mxu0 0
    %392 = vmatpush1.bf16.msra.mxu0 0
    %393 = vmatprep.subr.bf16.mxu0 0
    %394 = vmatpush1.bf16.msra.mxu0 0
    %395 = vmatprep.subr.bf16.mxu0 0
    %396 = vmatpush1.bf16.msra.mxu0 0
    %397 = vmatprep.subr.bf16.mxu0 0
    %398 = vmatpush1.bf16.msra.mxu0 0
    %399 = vmatprep.subr.bf16.mxu0 0
    %400 = vmatpush1.bf16.msra.mxu0 0
    %401 = vmatprep.mubr.bf16.mxu0 0
    %402 = vmatmul.mubr.bf16.gmra.mrb[0].mxu0 %v367
    %v403 = vpop.f32.mrb[0].mxu0
    %v404 = vadd.f32 0.0, %v403
    %v405 = vpop.f32.mrb[0].mxu0
    %v406 = vpop.f32.mrb[0].mxu0
    %v407 = vpop.f32.mrb[0].mxu0
    %408 = vdwg.mxu0
    %v409 = vmul.f32 %v243, %v352
    %411 = vrot.lane.b32.xlu0 %v352, 64
    %v412 = vpop.permute.xlu0 %411
    %v414 = vmul.f32 %v404, %v412
    %v415 = vadd.f32 %v409, %v414
    %v416 = vpack.c.bf16 %v298, %v298
    %418 = vrot.lane.b32.xlu0 %v416, 64
    %v419 = vpop.permute.xlu0 %418
    %v421 = vsel %vm86, %v419, 0
    %423 = vmatprep.subr.bf16.mxu0 0
    %424 = vmatpush1.bf16.msra.mxu0 %v355
    %425 = vmatprep.subr.bf16.mxu0 0
    %426 = vmatpush1.bf16.msra.mxu0 %v357
    %427 = vmatprep.subr.bf16.mxu0 0
    %428 = vmatpush1.bf16.msra.mxu0 0
    %429 = vmatprep.subr.bf16.mxu0 0
    %430 = vmatpush1.bf16.msra.mxu0 0
    %431 = vmatprep.subr.bf16.mxu0 0
    %432 = vmatpush1.bf16.msra.mxu0 0
    %433 = vmatprep.subr.bf16.mxu0 0
    %434 = vmatpush1.bf16.msra.mxu0 0
    %435 = vmatprep.subr.bf16.mxu0 0
    %436 = vmatpush1.bf16.msra.mxu0 0
    %437 = vmatprep.subr.bf16.mxu0 0
    %438 = vmatpush1.bf16.msra.mxu0 0
    %439 = vmatprep.subr.bf16.mxu0 0
    %440 = vmatpush1.bf16.msra.mxu0 0
    %441 = vmatprep.subr.bf16.mxu0 0
    %442 = vmatpush1.bf16.msra.mxu0 0
    %443 = vmatprep.subr.bf16.mxu0 0
    %444 = vmatpush1.bf16.msra.mxu0 0
    %445 = vmatprep.subr.bf16.mxu0 0
    %446 = vmatpush1.bf16.msra.mxu0 0
    %447 = vmatprep.subr.bf16.mxu0 0
    %448 = vmatpush1.bf16.msra.mxu0 0
    %449 = vmatprep.subr.bf16.mxu0 0
    %450 = vmatpush1.bf16.msra.mxu0 0
    %451 = vmatprep.subr.bf16.mxu0 0
    %452 = vmatpush1.bf16.msra.mxu0 0
    %453 = vmatprep.subr.bf16.mxu0 0
    %454 = vmatpush1.bf16.msra.mxu0 0
    %455 = vmatprep.mubr.bf16.mxu0 0
    %456 = vmatmul.mubr.bf16.gmra.mrb[0].mxu0 %v421
    %v457 = vpop.f32.mrb[0].mxu0
    %v458 = vadd.f32 0.0, %v457
    %v459 = vpop.f32.mrb[0].mxu0
    %v460 = vpop.f32.mrb[0].mxu0
    %v461 = vpop.f32.mrb[0].mxu0
    %462 = vdwg.mxu0
    %v463 = vmul.f32 %v298, %v412
    %v464 = vmul.f32 %v458, %v412
    %466 = vrot.lane.b32.xlu0 %v464, 64
    %v467 = vpop.permute.xlu0 %466
    %v469 = vadd.f32 %v463, %v467
    %v470 = vld [vmem:[%s6] sm:$0xff]
    %v471 = vld [vmem:[%s6 + $0x8] sm:$0xff]
    %v472 = vpack.c.bf16 %v469, %v469
    %v473 = vpack.c.bf16 %v351, %v351
    %475 = vrot.lane.b32.xlu0 %v415, 112
    %v476 = vpop.permute.xlu0 %475
    %v478 = vpack.c.bf16 %v476, %v415
    %480 = vrot.lane.b32.xlu0 %v472, 64
    %v481 = vpop.permute.xlu0 %480
    %vm482 = vcmask 130048
    %v484 = vsel %vm482, %v478, 0
    %v487 = vsel %vm482, %v481, 0
    %489 = vmatprep.subr.bf16.mxu0 0
    %490 = vmatpush1.bf16.xpose.msra.mxu0 %v487
    %491 = vmatprep.subr.bf16.mxu0 0
    %492 = vmatpush1.bf16.xpose.msra.mxu0 0
    %493 = vmatprep.subr.bf16.mxu0 0
    %494 = vmatpush1.bf16.xpose.msra.mxu0 0
    %495 = vmatprep.subr.bf16.mxu0 0
    %496 = vmatpush1.bf16.xpose.msra.mxu0 0
    %497 = vmatprep.subr.bf16.mxu0 0
    %498 = vmatpush1.bf16.xpose.msra.mxu0 0
    %499 = vmatprep.subr.bf16.mxu0 0
    %500 = vmatpush1.bf16.xpose.msra.mxu0 0
    %501 = vmatprep.subr.bf16.mxu0 0
    %502 = vmatpush1.bf16.xpose.msra.mxu0 0
    %503 = vmatprep.subr.bf16.mxu0 0
    %504 = vmatpush1.bf16.xpose.msra.mxu0 0
    %505 = vmatprep.subr.bf16.mxu0 0
    %506 = vmatpush1.bf16.xpose.msra.mxu0 0
    %507 = vmatprep.subr.bf16.mxu0 0
    %508 = vmatpush1.bf16.xpose.msra.mxu0 0
    %509 = vmatprep.subr.bf16.mxu0 0
    %510 = vmatpush1.bf16.xpose.msra.mxu0 0
    %511 = vmatprep.subr.bf16.mxu0 0
    %512 = vmatpush1.bf16.xpose.msra.mxu0 0
    %513 = vmatprep.subr.bf16.mxu0 0
    %514 = vmatpush1.bf16.xpose.msra.mxu0 0
    %515 = vmatprep.subr.bf16.mxu0 0
    %516 = vmatpush1.bf16.xpose.msra.mxu0 0
    %517 = vmatprep.subr.bf16.mxu0 0
    %518 = vmatpush1.bf16.xpose.msra.mxu0 0
    %519 = vmatprep.subr.bf16.mxu0 0
    %520 = vmatpush1.bf16.xpose.msra.mxu0 0
    %521 = vmatprep.mubr.bf16.mxu0 0
    %522 = vmatmul.mubr.bf16.gmra.mrb[0].mxu0 %v484
    %v523 = vpop.f32.mrb[0].mxu0
    %v524 = vadd.f32 %v470, %v523
    %v525 = vpop.f32.mrb[0].mxu0
    %v526 = vpop.f32.mrb[0].mxu0
    %v527 = vadd.f32 %v471, %v526
    %v528 = vpop.f32.mrb[0].mxu0
    %529 = vdwg.mxu0
    %vm530 = vcmask 64512
    %v531 = vsel %vm530, %v524, -inf
    %532 = vmax.xlane.f32.xlu0 %v531
    %v533 = vpop.xlane.xlu0 %532
    %v534 = vsel %vm530, %v527, -inf
    %535 = vmax.xlane.f32.xlu0 %v534
    %v536 = vpop.xlane.xlu0 %535
    %v537 = vsub.f32 %v524, %v533
    %v538 = vsub.f32 %v527, %v536
    %v539 = vmul.f32 %v537, 1.442695
    %v540 = vpow.pop %v539
    %v541 = vmul.f32 %v538, 1.442695
    %v542 = vpow.pop %v541
    %v543 = vsel %vm530, %v540, 0.0
    %544 = vadd.xlane.f32.xlu0 %v543
    %v545 = vpop.xlane.xlu0 %544
    %v546 = vsel %vm530, %v542, 0.0
    %547 = vadd.xlane.f32.xlu0 %v546
    %v548 = vpop.xlane.xlu0 %547
    %v549 = vpack.c.bf16 %v542, %v540
    %551 = vrot.lane.b32.xlu0 %v473, 32
    %v552 = vpop.permute.xlu0 %551
    %v554 = vsel %vm530, %v549, 0
    %vm556 = vcmask 1043456
    %v558 = vsel %vm556, %v552, 0
    %560 = vmatprep.subr.bf16.mxu0 0
    %561 = vmatpush1.bf16.msra.mxu0 %v558
    %562 = vmatprep.subr.bf16.mxu0 0
    %563 = vmatpush1.bf16.msra.mxu0 0
    %564 = vmatprep.subr.bf16.mxu0 0
    %565 = vmatpush1.bf16.msra.mxu0 0
    %566 = vmatprep.subr.bf16.mxu0 0
    %567 = vmatpush1.bf16.msra.mxu0 0
    %568 = vmatprep.subr.bf16.mxu0 0
    %569 = vmatpush1.bf16.msra.mxu0 0
    %570 = vmatprep.subr.bf16.mxu0 0
    %571 = vmatpush1.bf16.msra.mxu0 0
    %572 = vmatprep.subr.bf16.mxu0 0
    %573 = vmatpush1.bf16.msra.mxu0 0
    %574 = vmatprep.subr.bf16.mxu0 0
    %575 = vmatpush1.bf16.msra.mxu0 0
    %576 = vmatprep.subr.bf16.mxu0 0
    %577 = vmatpush1.bf16.msra.mxu0 0
    %578 = vmatprep.subr.bf16.mxu0 0
    %579 = vmatpush1.bf16.msra.mxu0 0
    %580 = vmatprep.subr.bf16.mxu0 0
    %581 = vmatpush1.bf16.msra.mxu0 0
    %582 = vmatprep.subr.bf16.mxu0 0
    %583 = vmatpush1.bf16.msra.mxu0 0
    %584 = vmatprep.subr.bf16.mxu0 0
    %585 = vmatpush1.bf16.msra.mxu0 0
    %586 = vmatprep.subr.bf16.mxu0 0
    %587 = vmatpush1.bf16.msra.mxu0 0
    %588 = vmatprep.subr.bf16.mxu0 0
    %589 = vmatpush1.bf16.msra.mxu0 0
    %590 = vmatprep.subr.bf16.mxu0 0
    %591 = vmatpush1.bf16.msra.mxu0 0
    %592 = vmatprep.mubr.bf16.mxu0 0
    %593 = vmatmul.mubr.bf16.gmra.mrb[0].mxu0 %v554
    %v594 = vpop.f32.mrb[0].mxu0
    %v595 = vadd.f32 0.0, %v594
    %v596 = vpop.f32.mrb[0].mxu0
    %v597 = vpop.f32.mrb[0].mxu0
    %v598 = vadd.f32 0.0, %v597
    %v599 = vpop.f32.mrb[0].mxu0
    %600 = vdwg.mxu0
    %v601 = vrcp.pop %v545
    %v602 = vrcp.pop %v548
    %v603 = vmul.f32 %v595, %v601
    %v604 = vmul.f32 %v598, %v602
    %v605 = vpack.c.bf16 %v604, %v603
    %vm606 = vcmask 125952
    %607 = vst.msk [vmem:[#allocation2] sm:$0xf] %vm606, %v605
    %v609 = vunpack.c.h.b16 %v605
    %v610 = vpack.c.b16 %v609, %v609
    %611 = vrot.lane.b32.xlu0 %v610, 16
    %v612 = vpop.permute.xlu0 %611
    %vm614 = vcmask 257152
    %615 = vst.msk [vmem:[#allocation2] sm:$0xf] %vm614, %v612
    %617 = vrot.lane.b32.xlu0 %v478, 96
    %v618 = vpop.permute.xlu0 %617
    %619 = vrot.lane.b32.xlu0 %v472, 48
    %v620 = vpop.permute.xlu0 %619
    %v622 = vsel %vm482, %v618, 0
    %v625 = vsel %vm482, %v620, 0
    %627 = vmatprep.subr.bf16.mxu0 0
    %628 = vmatpush1.bf16.xpose.msra.mxu0 %v625
    %629 = vmatprep.subr.bf16.mxu0 0
    %630 = vmatpush1.bf16.xpose.msra.mxu0 0
    %631 = vmatprep.subr.bf16.mxu0 0
    %632 = vmatpush1.bf16.xpose.msra.mxu0 0
    %633 = vmatprep.subr.bf16.mxu0 0
    %634 = vmatpush1.bf16.xpose.msra.mxu0 0
    %635 = vmatprep.subr.bf16.mxu0 0
    %636 = vmatpush1.bf16.xpose.msra.mxu0 0
    %637 = vmatprep.subr.bf16.mxu0 0
    %638 = vmatpush1.bf16.xpose.msra.mxu0 0
    %639 = vmatprep.subr.bf16.mxu0 0
    %640 = vmatpush1.bf16.xpose.msra.mxu0 0
    %641 = vmatprep.subr.bf16.mxu0 0
    %642 = vmatpush1.bf16.xpose.msra.mxu0 0
    %643 = vmatprep.subr.bf16.mxu0 0
    %644 = vmatpush1.bf16.xpose.msra.mxu0 0
    %645 = vmatprep.subr.bf16.mxu0 0
    %646 = vmatpush1.bf16.xpose.msra.mxu0 0
    %647 = vmatprep.subr.bf16.mxu0 0
    %648 = vmatpush1.bf16.xpose.msra.mxu0 0
    %649 = vmatprep.subr.bf16.mxu0 0
    %650 = vmatpush1.bf16.xpose.msra.mxu0 0
    %651 = vmatprep.subr.bf16.mxu0 0
    %652 = vmatpush1.bf16.xpose.msra.mxu0 0
    %653 = vmatprep.subr.bf16.mxu0 0
    %654 = vmatpush1.bf16.xpose.msra.mxu0 0
    %655 = vmatprep.subr.bf16.mxu0 0
    %656 = vmatpush1.bf16.xpose.msra.mxu0 0
    %657 = vmatprep.subr.bf16.mxu0 0
    %658 = vmatpush1.bf16.xpose.msra.mxu0 0
    %659 = vmatprep.mubr.bf16.mxu0 0
    %660 = vmatmul.mubr.bf16.gmra.mrb[0].mxu0 %v622
    %v661 = vpop.f32.mrb[0].mxu0
    %v662 = vadd.f32 %v470, %v661
    %v663 = vpop.f32.mrb[0].mxu0
    %v664 = vpop.f32.mrb[0].mxu0
    %v665 = vadd.f32 %v471, %v664
    %v666 = vpop.f32.mrb[0].mxu0
    %667 = vdwg.mxu0
    %v668 = vsel %vm530, %v662, -inf
    %669 = vmax.xlane.f32.xlu0 %v668
    %v670 = vpop.xlane.xlu0 %669
    %v671 = vsel %vm530, %v665, -inf
    %672 = vmax.xlane.f32.xlu0 %v671
    %v673 = vpop.xlane.xlu0 %672
    %v674 = vsub.f32 %v662, %v670
    %v675 = vsub.f32 %v665, %v673
    %v676 = vmul.f32 %v674, 1.442695
    %v677 = vpow.pop %v676
    %v678 = vmul.f32 %v675, 1.442695
    %v679 = vpow.pop %v678
    %v680 = vsel %vm530, %v677, 0.0
    %681 = vadd.xlane.f32.xlu0 %v680
    %v682 = vpop.xlane.xlu0 %681
    %v683 = vsel %vm530, %v679, 0.0
    %684 = vadd.xlane.f32.xlu0 %v683
    %v685 = vpop.xlane.xlu0 %684
    %v686 = vpack.c.bf16 %v679, %v677
    %687 = vrot.lane.b32.xlu0 %v473, 16
    %v688 = vpop.permute.xlu0 %687
    %v690 = vsel %vm530, %v686, 0
    %v693 = vsel %vm556, %v688, 0
    %695 = vmatprep.subr.bf16.mxu0 0
    %696 = vmatpush1.bf16.msra.mxu0 %v693
    %697 = vmatprep.subr.bf16.mxu0 0
    %698 = vmatpush1.bf16.msra.mxu0 0
    %699 = vmatprep.subr.bf16.mxu0 0
    %700 = vmatpush1.bf16.msra.mxu0 0
    %701 = vmatprep.subr.bf16.mxu0 0
    %702 = vmatpush1.bf16.msra.mxu0 0
    %703 = vmatprep.subr.bf16.mxu0 0
    %704 = vmatpush1.bf16.msra.mxu0 0
    %705 = vmatprep.subr.bf16.mxu0 0
    %706 = vmatpush1.bf16.msra.mxu0 0
    %707 = vmatprep.subr.bf16.mxu0 0
    %708 = vmatpush1.bf16.msra.mxu0 0
    %709 = vmatprep.subr.bf16.mxu0 0
    %710 = vmatpush1.bf16.msra.mxu0 0
    %711 = vmatprep.subr.bf16.mxu0 0
    %712 = vmatpush1.bf16.msra.mxu0 0
    %713 = vmatprep.subr.bf16.mxu0 0
    %714 = vmatpush1.bf16.msra.mxu0 0
    %715 = vmatprep.subr.bf16.mxu0 0
    %716 = vmatpush1.bf16.msra.mxu0 0
    %717 = vmatprep.subr.bf16.mxu0 0
    %718 = vmatpush1.bf16.msra.mxu0 0
    %719 = vmatprep.subr.bf16.mxu0 0
    %720 = vmatpush1.bf16.msra.mxu0 0
    %721 = vmatprep.subr.bf16.mxu0 0
    %722 = vmatpush1.bf16.msra.mxu0 0
    %723 = vmatprep.subr.bf16.mxu0 0
    %724 = vmatpush1.bf16.msra.mxu0 0
    %725 = vmatprep.subr.bf16.mxu0 0
    %726 = vmatpush1.bf16.msra.mxu0 0
    %727 = vmatprep.mubr.bf16.mxu0 0
    %728 = vmatmul.mubr.bf16.gmra.mrb[0].mxu0 %v690
    %v729 = vpop.f32.mrb[0].mxu0
    %v730 = vadd.f32 0.0, %v729
    %v731 = vpop.f32.mrb[0].mxu0
    %v732 = vpop.f32.mrb[0].mxu0
    %v733 = vadd.f32 0.0, %v732
    %v734 = vpop.f32.mrb[0].mxu0
    %735 = vdwg.mxu0
    %v736 = vrcp.pop %v682
    %v737 = vrcp.pop %v685
    %v738 = vmul.f32 %v730, %v736
    %v739 = vmul.f32 %v733, %v737
    %v740 = vpack.c.bf16 %v739, %v738
    %v742 = vunpack.c.l.b16 %v740
    %v743 = vpack.c.b16 %v742, %v742
    %744 = vrot.lane.b32.xlu0 %v743, 32
    %v745 = vpop.permute.xlu0 %744
    %vm747 = vcmask 388352
    %748 = vst.msk [vmem:[#allocation2] sm:$0xf] %vm747, %v745
    %v749 = vunpack.c.h.b16 %v740
    %v750 = vpack.c.b16 %v749, %v749
    %751 = vrot.lane.b32.xlu0 %v750, 48
    %v752 = vpop.permute.xlu0 %751
    %vm754 = vcmask 519552
    %755 = vst.msk [vmem:[#allocation2] sm:$0xf] %vm754, %v752
    %v756 = vld [vmem:[#allocation2] sm:$0xf]
    %v757 = vld [vmem:[%s2] sm:$0xf]
    %v758 = vld [vmem:[%s2 + $0x4] sm:$0xf]
    %v759 = vld [vmem:[%s2 + $0x8] sm:$0xf]
    %v760 = vld [vmem:[%s2 + $0xc] sm:$0xf]
    %v765 = vunpack.c.l.b16 %v757
    %v766 = vunpack.c.l.b16 %v758
    %v767 = vunpack.c.l.b16 %v759
    %v768 = vunpack.c.l.b16 %v760
    %v769 = vpack.c.b16 %v766, %v765
    %v770 = vpack.c.b16 %v768, %v767
    %v772 = vsel %vm189, %v756, 0
    %v775 = vsel %vm189, %v769, 0
    %v778 = vsel %vm189, %v770, 0
    %780 = vmatprep.subr.bf16.mxu0 0
    %781 = vmatpush1.bf16.xpose.msra.mxu0 %v775
    %782 = vmatprep.subr.bf16.mxu0 0
    %783 = vmatpush1.bf16.xpose.msra.mxu0 %v778
    %784 = vmatprep.subr.bf16.mxu0 0
    %785 = vmatpush1.bf16.xpose.msra.mxu0 0
    %786 = vmatprep.subr.bf16.mxu0 0
    %787 = vmatpush1.bf16.xpose.msra.mxu0 0
    %788 = vmatprep.subr.bf16.mxu0 0
    %789 = vmatpush1.bf16.xpose.msra.mxu0 0
    %790 = vmatprep.subr.bf16.mxu0 0
    %791 = vmatpush1.bf16.xpose.msra.mxu0 0
    %792 = vmatprep.subr.bf16.mxu0 0
    %793 = vmatpush1.bf16.xpose.msra.mxu0 0
    %794 = vmatprep.subr.bf16.mxu0 0
    %795 = vmatpush1.bf16.xpose.msra.mxu0 0
    %796 = vmatprep.subr.bf16.mxu0 0
    %797 = vmatpush1.bf16.xpose.msra.mxu0 0
    %798 = vmatprep.subr.bf16.mxu0 0
    %799 = vmatpush1.bf16.xpose.msra.mxu0 0
    %800 = vmatprep.subr.bf16.mxu0 0
    %801 = vmatpush1.bf16.xpose.msra.mxu0 0
    %802 = vmatprep.subr.bf16.mxu0 0
    %803 = vmatpush1.bf16.xpose.msra.mxu0 0
    %804 = vmatprep.subr.bf16.mxu0 0
    %805 = vmatpush1.bf16.xpose.msra.mxu0 0
    %806 = vmatprep.subr.bf16.mxu0 0
    %807 = vmatpush1.bf16.xpose.msra.mxu0 0
    %808 = vmatprep.subr.bf16.mxu0 0
    %809 = vmatpush1.bf16.xpose.msra.mxu0 0
    %810 = vmatprep.subr.bf16.mxu0 0
    %811 = vmatpush1.bf16.xpose.msra.mxu0 0
    %812 = vmatprep.mubr.bf16.mxu0 0
    %813 = vmatmul.mubr.bf16.gmra.mrb[0].mxu0 %v772
    %v814 = vpop.f32.mrb[0].mxu0
    %v815 = vadd.f32 0.0, %v814
    %v816 = vpop.f32.mrb[0].mxu0
    %v817 = vpop.f32.mrb[0].mxu0
    %v818 = vpop.f32.mrb[0].mxu0
    %819 = vdwg.mxu0
    %820 = vst.msk [vmem:[#allocation3] sm:$0xff] %vm86, %v815
    // Predicated region
    $region30: #{gemma3n_attention_forward.1} parent=1 // pred_check
      _
    $region31: #{gemma3n_attention_forward.1} parent=1 // pred_check_branch
      %822 = sbr.rel (0) target = $region33
    $region32: #{gemma3n_attention_forward.1} parent=1 // pred_region
      %s824 = ssub.s32 128, 128
      %825 = vsyncadd [#allocation4], %s824
      %s827 = sshll.u32 [#allocation3], 4
      %s828 = int_to_ptr.vmem [resolvable:$true] %s827
      %830 = dma.vmem_to_hbm [thread:$0]  %s828, 128, %s7, [#allocation4]
    $region33: #{gemma3n_attention_forward.1} parent=1 // pred_fallthru
      _
    // Predicated region
    $region34: #{gemma3n_attention_forward.1} parent=1 // pred_check
      _
    $region35: #{gemma3n_attention_forward.1} parent=1 // pred_check_branch
      %832 = sbr.rel (0) target = $region37
    $region36: #{gemma3n_attention_forward.1} parent=1 // pred_region
      %833 = dma.done [#allocation4], 128
    $region37: #{gemma3n_attention_forward.1} parent=1 // pred_fallthru
      _
    %834 = vsyncpa [#allocation4], 1

</llo_original>
